<compile_context>
chip_gen: v6e
topology: v6e:2x2x1
jax: 0.10.0
libtpu: 0.0.40
codegen_flags: <defaults>
</compile_context>

<pallas_src>
import functools

import jax
import jax.numpy as jnp
from jax import lax
from jax.experimental import pallas as pl
from jax.experimental.pallas import tpu as pltpu


def _dice_kernel(x_ref, t_ref, inter_out_ref, denom_out_ref,
                 inter_acc, denom_acc, *,
                 rows_total: int, tile_r: int, lanes: int, ragged: bool):
    """inter_acc / denom_acc are small (acc_rows, L) f32 running partials."""
    k = pl.program_id(1)

    @pl.when(k == 0)
    def _():
        inter_acc[...] = jnp.zeros_like(inter_acc)
        denom_acc[...] = jnp.zeros_like(denom_acc)

    # Per-tile cast on the VPU; inputs arrive in their native dtype.
    x = x_ref[...].astype(jnp.float32)          # (1, tile_r, L)
    t = t_ref[...].astype(jnp.float32)

    if ragged:
        # Rare fallback: zero rows of the partial last tile (masks both x and t
        # so both the x*t and x+t contributions vanish).
        row = lax.broadcasted_iota(jnp.int32, x.shape, dimension=1)
        valid = (k * tile_r + row) < rows_total
        x = jnp.where(valid, x, 0.0)
        t = jnp.where(valid, t, 0.0)

    prod = x * t
    ssum = x + t

    if tile_r % 8 == 0:
        # Fold tile_r rows down to one sublane group (8 rows) with pure
        # element-wise vreg adds — no cross-lane/XLU work per tile.
        g = tile_r // 8
        prod = prod.reshape(g, 8, lanes)
        ssum = ssum.reshape(g, 8, lanes)
        if g > 1:
            prod = jnp.sum(prod, axis=0)        # (8, L)
            ssum = jnp.sum(ssum, axis=0)
        else:
            prod = prod.reshape(8, lanes)
            ssum = ssum.reshape(8, lanes)
    else:
        # Single-tile fallback (tile_r == full extent, not a multiple of 8).
        prod = prod.reshape(tile_r, lanes)
        ssum = ssum.reshape(tile_r, lanes)

    inter_acc[...] += prod
    denom_acc[...] += ssum

    @pl.when(k == pl.num_programs(1) - 1)
    def _():
        # Tiny final cross-lane/sublane reduce (acc_rows x L elements only).
        inter = jnp.sum(inter_acc[...], keepdims=True)   # (1, 1)
        denom = jnp.sum(denom_acc[...], keepdims=True)
        inter_out_ref[...] = jnp.broadcast_to(
            inter, inter_out_ref.shape).astype(inter_out_ref.dtype)
        denom_out_ref[...] = jnp.broadcast_to(
            denom, denom_out_ref.shape).astype(denom_out_ref.dtype)


def _pick_divisor_tile(r: int, target_rows: int):
    """Multiple-of-8 divisor of r near target_rows, or None."""
    floor = max(8, ((target_rows // 4) // 8) * 8)
    d = (min(target_rows, r) // 8) * 8
    while d >= floor:                   # prefer the largest divisor <= target
        if r % d == 0:
            return d
        d -= 8
    d = ((target_rows // 8) + 1) * 8    # else look modestly above the target
    limit = min(2 * target_rows, r)
    while d <= limit:
        if r % d == 0:
            return d
        d += 8
    return None


def dice_loss(inputs: jax.Array, targets: jax.Array, eps: float = 1e-6,
              *, block_bytes: int | None = None) -> jax.Array:
    """Matches torch DiceLoss.forward: returns a (B,) float32 loss."""
    assert inputs.shape == targets.shape
    b = inputs.shape[0]
    x = inputs.reshape(b, -1)           # keep native dtype (no HBM upcast pass)
    t = targets.reshape(b, -1)
    n = x.shape[1]

    # Rare fallback only: lane-align N. Zero padding is a no-op for both sums.
    if n % 128 != 0:
        pad = 128 - n % 128
        x = jnp.pad(x, ((0, 0), (0, pad)))
        t = jnp.pad(t, ((0, 0), (0, pad)))
        n += pad

    # Lane-dense layout: (B, N) -> (B, R, L), L a multiple of 128.
    L = 512 if n % 512 == 0 else (256 if n % 256 == 0 else 128)
    r = n // L

    # Odd / single batch: split R in two (free row-major reshape) so the
    # "parallel" batch axis has even work for both TensorCores on v7x.
    split = 2 if (b % 2 == 1 and r % 2 == 0 and r // 2 >= 8) else 1
    b_eff = b * split
    r_eff = r // split
    x = x.reshape(b_eff, r_eff, L)
    t = t.reshape(b_eff, r_eff, L)

    # Generation-aware VMEM budget: ~64 MiB on v5e/v6e (128 MiB physical),
    # ~48 MiB on v7x (64 MiB physical per TC).
    try:
        vmem_cap = int(pltpu.get_tpu_info().vmem_capacity_bytes)
    except Exception:
        vmem_cap = 64 * 1024 * 1024
    vmem_limit = min(64 * 1024 * 1024, (vmem_cap * 3) // 4)

    if block_bytes is None:
        block_bytes = min(8 * 1024 * 1024, max(2 * 1024 * 1024, vmem_limit // 8))

    itemsize = max(jnp.dtype(x.dtype).itemsize, jnp.dtype(t.dtype).itemsize)
    target_rows = max(block_bytes // (L * itemsize), 8)

    if r_eff <= target_rows:
        tile_r = r_eff                  # full extent (legal even if % 8 != 0)
    else:
        tile_r = _pick_divisor_tile(r_eff, target_rows)
        if tile_r is None:
            tile_r = max((target_rows // 8) * 8, 8)   # ragged fallback
    num_k = pl.cdiv(r_eff, tile_r)
    ragged = (r_eff % tile_r) != 0
    acc_rows = 8 if tile_r % 8 == 0 else tile_r

    kernel = functools.partial(_dice_kernel, rows_total=r_eff, tile_r=tile_r,
                               lanes=L, ragged=ragged)

    # Partial (inter, denom) per pseudo-batch row; each output block is a
    # dense, unmasked (8, 128) tile, disjoint across the parallel batch axis.
    inter, denom = pl.pallas_call(
        kernel,
        out_shape=(jax.ShapeDtypeStruct((b_eff, 8, 128), jnp.float32),
                   jax.ShapeDtypeStruct((b_eff, 8, 128), jnp.float32)),
        grid_spec=pltpu.PrefetchScalarGridSpec(
            num_scalar_prefetch=0,
            grid=(b_eff, num_k),
            in_specs=[
                pl.BlockSpec((1, tile_r, L), lambda i, k: (i, k, 0)),
                pl.BlockSpec((1, tile_r, L), lambda i, k: (i, k, 0)),
            ],
            out_specs=[
                pl.BlockSpec((1, 8, 128), lambda i, k: (i, 0, 0)),
                pl.BlockSpec((1, 8, 128), lambda i, k: (i, 0, 0)),
            ],
            scratch_shapes=[
                pltpu.VMEM((acc_rows, L), jnp.float32),
                pltpu.VMEM((acc_rows, L), jnp.float32),
            ],
        ),
        compiler_params=pltpu.CompilerParams(
            dimension_semantics=("parallel", "arbitrary"),
            vmem_limit_bytes=int(vmem_limit),
        ),
    )(x, t)

    inter = inter[:, 0, 0]
    denom = denom[:, 0, 0]
    if split > 1:
        inter = inter.reshape(b, split).sum(axis=1)
        denom = denom.reshape(b, split).sum(axis=1)

    dice = 2.0 * inter / (denom + eps)
    return 1.0 - dice


if __name__ == "__main__":
    key = jax.random.PRNGKey(0)

    def ref_dice(inputs, targets, eps=1e-6):
        bb = inputs.shape[0]
        xi = inputs.reshape(bb, -1).astype(jnp.float32)
        ti = targets.reshape(bb, -1).astype(jnp.float32)
        inter = jnp.sum(xi * ti, axis=-1)
        den = jnp.sum(xi + ti, axis=-1)
        return 1.0 - 2.0 * inter / (den + eps)

    def check(name, inputs, targets, **kw):
        loss = dice_loss(inputs, targets, **kw)
        jax.block_until_ready(loss)
        ref = ref_dice(inputs, targets, kw.get("eps", 1e-6))
        assert loss.shape == ref.shape, (name, loss.shape, ref.shape)
        assert jnp.allclose(loss, ref, atol=1e-4, rtol=1e-4), (name, loss, ref)

    # 1) Primary small-shape case (NCHW: batch=2, channels=4, spatial=16x16).
    k1, k2 = jax.random.split(key)
    shape = (2, 4, 16, 16)
    x1 = jax.nn.sigmoid(jax.random.normal(k1, shape, dtype=jnp.float32))
    t1 = (jax.random.uniform(k2, shape) > 0.5).astype(jnp.float32)
    check("base", x1, t1)

    # 2) batch=1 -> two-way R split (keeps both TCs busy on v7x), bf16 inputs.
    k3, k4 = jax.random.split(k1)
    shape = (1, 8, 32, 32)
    x2 = jax.nn.sigmoid(jax.random.normal(k3, shape, jnp.float32)).astype(jnp.bfloat16)
    t2 = (jax.random.uniform(k4, shape) > 0.5).astype(jnp.bfloat16)
    check("split_bf16", x2, t2)

    # 3) Multi-step reduction + grouped (g>1) accumulators (small forced blocks).
    k5, k6 = jax.random.split(k2)
    shape = (2, 16, 32, 32)
    x3 = jax.nn.sigmoid(jax.random.normal(k5, shape, jnp.float32))
    t3 = (jax.random.uniform(k6, shape) > 0.5).astype(jnp.float32)
    check("multi_k", x3, t3, block_bytes=16 * 512 * 4)

    # 4) Ragged last tile fallback (R=36 has no multiple-of-8 divisor).
    k7, k8 = jax.random.split(k5)
    x4 = jax.nn.sigmoid(jax.random.normal(k7, (2, 36 * 512), jnp.float32))
    t4 = (jax.random.uniform(k8, (2, 36 * 512)) > 0.5).astype(jnp.float32)
    check("ragged", x4, t4, block_bytes=16 * 512 * 4)

    # 5) Lane padding (N % 128 != 0).
    k9, k10 = jax.random.split(k7)
    x5 = jax.nn.sigmoid(jax.random.normal(k9, (2, 100), jnp.float32))
    t5 = (jax.random.uniform(k10, (2, 100)) > 0.5).astype(jnp.float32)
    check("lane_pad", x5, t5)

    print("KERNEL_OK")
</pallas_src>

<mosaic_0001>
module attributes {stable_mosaic.version = 11 : i64} {
  func.func @_dice_kernel(%arg0: i32, %arg1: i32, %arg2: memref<1x2x512xf32, #tpu.memory_space<vmem>>, %arg3: memref<1x2x512xf32, #tpu.memory_space<vmem>>, %arg4: memref<1x8x128xf32, #tpu.memory_space<vmem>>, %arg5: memref<1x8x128xf32, #tpu.memory_space<vmem>>, %arg6: memref<2x512xf32, #tpu.memory_space<vmem>>, %arg7: memref<2x512xf32, #tpu.memory_space<vmem>>) attributes {dimension_semantics = [#tpu.dimension_semantics<parallel>, #tpu.dimension_semantics<arbitrary>], iteration_bounds = array<i64: 2, 1>, scalar_prefetch = 0 : i64, scratch_operands = 2 : i64, tpu.core_type = #tpu.core_type<tc>, window_params = [{transform_indices = @transform_0, window_bounds = array<i64: 1, 2, 512>}, {transform_indices = @transform_1, window_bounds = array<i64: 1, 2, 512>}, {transform_indices = @transform_2, window_bounds = array<i64: 1, 8, 128>}, {transform_indices = @transform_3, window_bounds = array<i64: 1, 8, 128>}]} {
    %c0_i32 = arith.constant 0 : i32
    %0 = arith.cmpi eq, %arg1, %c0_i32 : i32
    %1 = arith.extui %0 : i1 to i32
    %c0_i32_0 = arith.constant 0 : i32
    %2 = arith.cmpi ne, %1, %c0_i32_0 : i32
    scf.if %2 {
      %cst = arith.constant 0.000000e+00 : f32
      %18 = vector.broadcast %cst : f32 to vector<2x512xf32>
      %c0_16 = arith.constant 0 : index
      %c0_17 = arith.constant 0 : index
      %19 = vector.load %arg6[%c0_16, %c0_17] : memref<2x512xf32, #tpu.memory_space<vmem>>, vector<2x512xf32>
      tpu.vector_store %arg6[%c0_16, %c0_17], %18 {strides = array<i32>} : memref<2x512xf32, #tpu.memory_space<vmem>>, vector<2x512xf32>,
      %cst_18 = arith.constant 0.000000e+00 : f32
      %20 = vector.broadcast %cst_18 : f32 to vector<2x512xf32>
      %c0_19 = arith.constant 0 : index
      %c0_20 = arith.constant 0 : index
      %21 = vector.load %arg7[%c0_19, %c0_20] : memref<2x512xf32, #tpu.memory_space<vmem>>, vector<2x512xf32>
      tpu.vector_store %arg7[%c0_19, %c0_20], %20 {strides = array<i32>} : memref<2x512xf32, #tpu.memory_space<vmem>>, vector<2x512xf32>,
    } else {
    }
    %c0 = arith.constant 0 : index
    %c0_1 = arith.constant 0 : index
    %c0_2 = arith.constant 0 : index
    %3 = vector.load %arg2[%c0, %c0_1, %c0_2] : memref<1x2x512xf32, #tpu.memory_space<vmem>>, vector<1x2x512xf32>
    %c0_3 = arith.constant 0 : index
    %c0_4 = arith.constant 0 : index
    %c0_5 = arith.constant 0 : index
    %4 = vector.load %arg3[%c0_3, %c0_4, %c0_5] : memref<1x2x512xf32, #tpu.memory_space<vmem>>, vector<1x2x512xf32>
    %5 = arith.mulf %3, %4 : vector<1x2x512xf32>
    %6 = arith.addf %3, %4 : vector<1x2x512xf32>
    %7 = vector.shape_cast %5 : vector<1x2x512xf32> to vector<2x512xf32>
    %8 = vector.shape_cast %6 : vector<1x2x512xf32> to vector<2x512xf32>
    %c0_6 = arith.constant 0 : index
    %c0_7 = arith.constant 0 : index
    %9 = vector.load %arg6[%c0_6, %c0_7] : memref<2x512xf32, #tpu.memory_space<vmem>>, vector<2x512xf32>
    %10 = arith.addf %9, %7 : vector<2x512xf32>
    %c0_8 = arith.constant 0 : index
    %c0_9 = arith.constant 0 : index
    %11 = vector.load %arg6[%c0_8, %c0_9] : memref<2x512xf32, #tpu.memory_space<vmem>>, vector<2x512xf32>
    tpu.vector_store %arg6[%c0_8, %c0_9], %10 {strides = array<i32>} : memref<2x512xf32, #tpu.memory_space<vmem>>, vector<2x512xf32>,
    %c0_10 = arith.constant 0 : index
    %c0_11 = arith.constant 0 : index
    %12 = vector.load %arg7[%c0_10, %c0_11] : memref<2x512xf32, #tpu.memory_space<vmem>>, vector<2x512xf32>
    %13 = arith.addf %12, %8 : vector<2x512xf32>
    %c0_12 = arith.constant 0 : index
    %c0_13 = arith.constant 0 : index
    %14 = vector.load %arg7[%c0_12, %c0_13] : memref<2x512xf32, #tpu.memory_space<vmem>>, vector<2x512xf32>
    tpu.vector_store %arg7[%c0_12, %c0_13], %13 {strides = array<i32>} : memref<2x512xf32, #tpu.memory_space<vmem>>, vector<2x512xf32>,
    %c0_i32_14 = arith.constant 0 : i32
    %15 = arith.cmpi eq, %arg1, %c0_i32_14 : i32
    %16 = arith.extui %15 : i1 to i32
    %c0_i32_15 = arith.constant 0 : i32
    %17 = arith.cmpi ne, %16, %c0_i32_15 : i32
    scf.if %17 {
      %c0_16 = arith.constant 0 : index
      %c0_17 = arith.constant 0 : index
      %18 = vector.load %arg6[%c0_16, %c0_17] : memref<2x512xf32, #tpu.memory_space<vmem>>, vector<2x512xf32>
      %19 = vector.shape_cast %18 : vector<2x512xf32> to vector<1x2x512xf32>
      %cst = arith.constant dense<0.000000e+00> : vector<1xf32>
      %20 = vector.multi_reduction <add>, %19, %cst [1, 2] : vector<1x2x512xf32> to vector<1xf32>
      %21 = vector.shape_cast %20 : vector<1xf32> to vector<1x1x1xf32>
      %22 = vector.extract %21[0, 0, 0] : f32 from vector<1x1x1xf32>
      %23 = vector.broadcast %22 : f32 to vector<1x1xf32>
      %c0_18 = arith.constant 0 : index
      %c0_19 = arith.constant 0 : index
      %24 = vector.load %arg7[%c0_18, %c0_19] : memref<2x512xf32, #tpu.memory_space<vmem>>, vector<2x512xf32>
      %25 = vector.shape_cast %24 : vector<2x512xf32> to vector<1x2x512xf32>
      %cst_20 = arith.constant dense<0.000000e+00> : vector<1xf32>
      %26 = vector.multi_reduction <add>, %25, %cst_20 [1, 2] : vector<1x2x512xf32> to vector<1xf32>
      %27 = vector.shape_cast %26 : vector<1xf32> to vector<1x1x1xf32>
      %28 = vector.extract %27[0, 0, 0] : f32 from vector<1x1x1xf32>
      %29 = vector.broadcast %28 : f32 to vector<1x1xf32>
      %30 = vector.shape_cast %23 : vector<1x1xf32> to vector<1x1x1xf32>
      %31 = vector.broadcast %30 : vector<1x1x1xf32> to vector<1x8x128xf32>
      %c0_21 = arith.constant 0 : index
      %c0_22 = arith.constant 0 : index
      %c0_23 = arith.constant 0 : index
      %32 = vector.load %arg4[%c0_21, %c0_22, %c0_23] : memref<1x8x128xf32, #tpu.memory_space<vmem>>, vector<1x8x128xf32>
      tpu.vector_store %arg4[%c0_21, %c0_22, %c0_23], %31 {strides = array<i32>} : memref<1x8x128xf32, #tpu.memory_space<vmem>>, vector<1x8x128xf32>,
      %33 = vector.shape_cast %29 : vector<1x1xf32> to vector<1x1x1xf32>
      %34 = vector.broadcast %33 : vector<1x1x1xf32> to vector<1x8x128xf32>
      %c0_24 = arith.constant 0 : index
      %c0_25 = arith.constant 0 : index
      %c0_26 = arith.constant 0 : index
      %35 = vector.load %arg5[%c0_24, %c0_25, %c0_26] : memref<1x8x128xf32, #tpu.memory_space<vmem>>, vector<1x8x128xf32>
      tpu.vector_store %arg5[%c0_24, %c0_25, %c0_26], %34 {strides = array<i32>} : memref<1x8x128xf32, #tpu.memory_space<vmem>>, vector<1x8x128xf32>,
    } else {
    }
    return
  }
  func.func @transform_0(%arg0: i32, %arg1: i32) -> (i32, i32, i32) {
    %c0_i32 = arith.constant 0 : i32
    %c0_i32_0 = arith.constant 0 : i32
    return %arg0, %arg1, %c0_i32 : i32, i32, i32
  }
  func.func @transform_1(%arg0: i32, %arg1: i32) -> (i32, i32, i32) {
    %c0_i32 = arith.constant 0 : i32
    %c0_i32_0 = arith.constant 0 : i32
    return %arg0, %arg1, %c0_i32 : i32, i32, i32
  }
  func.func @transform_2(%arg0: i32, %arg1: i32) -> (i32, i32, i32) {
    %c0_i32 = arith.constant 0 : i32
    %c0_i32_0 = arith.constant 0 : i32
    %c0_i32_1 = arith.constant 0 : i32
    return %arg0, %c0_i32, %c0_i32_0 : i32, i32, i32
  }
  func.func @transform_3(%arg0: i32, %arg1: i32) -> (i32, i32, i32) {
    %c0_i32 = arith.constant 0 : i32
    %c0_i32_0 = arith.constant 0 : i32
    %c0_i32_1 = arith.constant 0 : i32
    return %arg0, %c0_i32, %c0_i32_0 : i32, i32, i32
  }
}

</mosaic_0001>

<llo_original>
// kernel: tpu_custom_call.1
$region0: #{tpu_custom_call.1}
  #allocation0 [shape = 'u32[]', space=smem, size = 0x4, offset = 0x4, fixed_abs, tag = 'smem constant byte address 0x4 - core index']
  #allocation1 [shape = 'u32[144,128]{1,0:T(1,128)}', space=vmem, size = 0x12000, scoped, tag = 'internal scratch']
  #allocation2 [shape = 'f32[2,512]{1,0:T(2,128)}', space=vmem, size = 0x1000, scoped, tag = 'scratch operand']
  #allocation3 [shape = 'f32[2,512]{1,0:T(2,128)}', space=vmem, size = 0x1000, scoped, tag = 'scratch operand']
  %s0 = inlined_call_operand.hbm [shape: f32[2,2,512], index: 0, kind: input, shape index: {}]
  %s1 = inlined_call_operand.hbm [shape: f32[2,2,512], index: 1, kind: input, shape index: {}]
  %s2 = inlined_call_operand.hbm [shape: f32[2,8,128], index: 2, kind: output, shape index: {0}]
  %s3 = inlined_call_operand.hbm [shape: f32[2,8,128], index: 3, kind: output, shape index: {1}]
  %4 = xla_tuple %s2, %s3
  %s5 = sld [smem:[#allocation0]]
  $region65: #{tpu_custom_call.1} parent=0
    _
  %s7 = ssub.s32 1, %s5
  %s8 = scalar_select 0, %s7, %s5
  $region1: #{tpu_custom_call.1} parent=0
    #allocation4 [shape = 'u8[8192]{0}', space=vmem, size = 0x2000, scoped, tag = 'input window, operand 0']
    #allocation5 [shape = 's32[2]{0}', space=sflag, size = 0x8, scoped, tag = 'scoped memory for tpu_custom_call.1']
    #allocation6 [shape = 's32[2]{0}', space=sflag, size = 0x8, scoped, tag = 'scoped memory for tpu_custom_call.1']
    #allocation7 [shape = 'u8[8192]{0}', space=vmem, size = 0x2000, scoped, tag = 'input window, operand 1']
    #allocation8 [shape = 's32[2]{0}', space=sflag, size = 0x8, scoped, tag = 'scoped memory for tpu_custom_call.1']
    #allocation9 [shape = 'u8[8192]{0}', space=vmem, size = 0x2000, scoped, tag = 'output window, operand 0']
    #allocation10 [shape = 'u8[8192]{0}', space=vmem, size = 0x2000, scoped, tag = 'output window, operand 1']
    #allocation11 [shape = 's32[2]{0}', space=sflag, size = 0x8, scoped, tag = 'scoped memory for tpu_custom_call.1']
    %9 = vsyncpa [#allocation5], 0
    %s10 = scalar_lea.sflag [#allocation5], 1
    %11 = vsyncpa %s10, 0
    %12 = vsyncpa [#allocation8], 0
    %s13 = scalar_lea.sflag [#allocation8], 1
    %14 = vsyncpa %s13, 0
    %15 = vsyncpa [#allocation6], 0
    %s16 = scalar_lea.sflag [#allocation6], 1
    %17 = vsyncpa %s16, 0
    %18 = vsyncpa [#allocation11], 0
    %s19 = scalar_lea.sflag [#allocation11], 1
    %20 = vsyncpa %s19, 0
    loop: start=0, step=1, limit=4
    $region2: #{tpu_custom_call.1} parent=1 // loop_pre_header
      _
    $region3: #{tpu_custom_call.1} parent=1 // loop_header
      %s22 = sphi 0, %s26
      %p23 = scmp.ge.s32.totalorder %s22, 4
      %s29 = sphi 0, %s41
      %s30 = sphi 0, %s37
      %s31 = sphi 0, %s29
      %s32 = sphi 0, %s30
      %s33 = sphi 0, %s31
      %s34 = sphi 0, %s32
      %s46 = sphi 0, %s48
      %s49 = sphi 0, %s46
      %s50 = sphi 0, %s49
      %s66 = sphi 0, %s50
      %s74 = sphi 0, %s76
      %s77 = sphi 0, %s74
      %s78 = sphi 0, %s77
      %s94 = sphi 0, %s78
      %s100 = sphi 0, %s102
      %s103 = sphi 0, %s100
      %s104 = sphi 0, %s103
      %s120 = sphi 0, %s104
      %s126 = sphi 0, %s128
      %s129 = sphi 0, %s126
      %s130 = sphi 0, %s129
      %s146 = sphi 0, %s130
    $region4: #{tpu_custom_call.1} parent=1 // loop_header_branch
      %25 = sbr.rel (%p23) target = $region8
    $region5: #{tpu_custom_call.1} parent=1 // loop_body
      %s27 = ssub.s32 %s22, 1
      %s28 = ssub.s32 %s22, 2
      %s35 = sadd.s32 1, %s30
      %p36 = scmp.ge.s32.totalorder %s35, 1
      %s37 = scalar_select %p36, 0, %s35
      %s38 = sadd.s32 1, %s29
      %s39 = scalar_select %p36, %s38, %s29
      %p40 = scmp.ge.s32.totalorder %s39, 2
      %s41 = scalar_select %p40, 0, %s39
      %s42 = ssub.s32 %s29, %s41
      %s43 = ssub.s32 %s30, %s37
      %s44 = sor.u32 %s42, %s43
      %p45 = scmp.eq.s32.totalorder %s44, 0
      %s47 = sadd.s32 %s46, 1
      %s48 = scalar_select %p45, %s46, %s47
      %p51 = pneg %p45
      %p52 = scmp.eq.s32.totalorder %s22, 1
      %p53 = por %p51, %p52
      %p54 = scmp.ne.s32.totalorder %s46, %s49
      %p55 = scmp.eq.s32.totalorder %s22, 0
      %p56 = por %p54, %p55
      %p57 = scmp.ne.s32.totalorder %s46, %s49
      %p58 = scmp.eq.s32.totalorder %s27, 1
      %p59 = por %p57, %p58
      %p60 = scmp.ne.s32.totalorder %s49, %s50
      %p61 = scmp.eq.s32.totalorder %s27, 0
      %p62 = por %p60, %p61
      %p63 = scmp.ne.s32.totalorder %s49, %s50
      %p64 = scmp.eq.s32.totalorder %s28, 1
      %p65 = por %p63, %p64
      %p67 = scmp.ne.s32.totalorder %s50, %s66
      %p68 = scmp.eq.s32.totalorder %s28, 0
      %p69 = por %p67, %p68
      %s70 = ssub.s32 %s29, %s41
      %s71 = ssub.s32 %s30, %s37
      %s72 = sor.u32 %s70, %s71
      %p73 = scmp.eq.s32.totalorder %s72, 0
      %s75 = sadd.s32 %s74, 1
      %s76 = scalar_select %p73, %s74, %s75
      %p79 = pneg %p73
      %p80 = scmp.eq.s32.totalorder %s22, 1
      %p81 = por %p79, %p80
      %p82 = scmp.ne.s32.totalorder %s74, %s77
      %p83 = scmp.eq.s32.totalorder %s22, 0
      %p84 = por %p82, %p83
      %p85 = scmp.ne.s32.totalorder %s74, %s77
      %p86 = scmp.eq.s32.totalorder %s27, 1
      %p87 = por %p85, %p86
      %p88 = scmp.ne.s32.totalorder %s77, %s78
      %p89 = scmp.eq.s32.totalorder %s27, 0
      %p90 = por %p88, %p89
      %p91 = scmp.ne.s32.totalorder %s77, %s78
      %p92 = scmp.eq.s32.totalorder %s28, 1
      %p93 = por %p91, %p92
      %p95 = scmp.ne.s32.totalorder %s78, %s94
      %p96 = scmp.eq.s32.totalorder %s28, 0
      %p97 = por %p95, %p96
      %s98 = ssub.s32 %s29, %s41
      %p99 = scmp.eq.s32.totalorder %s98, 0
      %s101 = sadd.s32 %s100, 1
      %s102 = scalar_select %p99, %s100, %s101
      %p105 = pneg %p99
      %p106 = scmp.eq.s32.totalorder %s22, 1
      %p107 = por %p105, %p106
      %p108 = scmp.ne.s32.totalorder %s100, %s103
      %p109 = scmp.eq.s32.totalorder %s22, 0
      %p110 = por %p108, %p109
      %p111 = scmp.ne.s32.totalorder %s100, %s103
      %p112 = scmp.eq.s32.totalorder %s27, 1
      %p113 = por %p111, %p112
      %p114 = scmp.ne.s32.totalorder %s103, %s104
      %p115 = scmp.eq.s32.totalorder %s27, 0
      %p116 = por %p114, %p115
      %p117 = scmp.ne.s32.totalorder %s103, %s104
      %p118 = scmp.eq.s32.totalorder %s28, 1
      %p119 = por %p117, %p118
      %p121 = scmp.ne.s32.totalorder %s104, %s120
      %p122 = scmp.eq.s32.totalorder %s28, 0
      %p123 = por %p121, %p122
      %s124 = ssub.s32 %s29, %s41
      %p125 = scmp.eq.s32.totalorder %s124, 0
      %s127 = sadd.s32 %s126, 1
      %s128 = scalar_select %p125, %s126, %s127
      %p131 = pneg %p125
      %p132 = scmp.eq.s32.totalorder %s22, 1
      %p133 = por %p131, %p132
      %p134 = scmp.ne.s32.totalorder %s126, %s129
      %p135 = scmp.eq.s32.totalorder %s22, 0
      %p136 = por %p134, %p135
      %p137 = scmp.ne.s32.totalorder %s126, %s129
      %p138 = scmp.eq.s32.totalorder %s27, 1
      %p139 = por %p137, %p138
      %p140 = scmp.ne.s32.totalorder %s129, %s130
      %p141 = scmp.eq.s32.totalorder %s27, 0
      %p142 = por %p140, %p141
      %p143 = scmp.ne.s32.totalorder %s129, %s130
      %p144 = scmp.eq.s32.totalorder %s28, 1
      %p145 = por %p143, %p144
      %p147 = scmp.ne.s32.totalorder %s130, %s146
      %p148 = scmp.eq.s32.totalorder %s28, 0
      %p149 = por %p147, %p148
      %p150 = scmp.le.s32.totalorder 1, %s22
      %p151 = scmp.lt.s32.totalorder %s22, 3
      %p152 = pnand %p150, %p151
      %p153 = pneg %p152
      // Predicated region
      $region9: #{tpu_custom_call.1} parent=5 // pred_check
        _
      $region10: #{tpu_custom_call.1} parent=5 // pred_check_branch
        %155 = sbr.rel (%p152) target = $region12
      $region11: #{tpu_custom_call.1} parent=5 // pred_region
        %s156 = ssub.s32 %s22, 1
      $region12: #{tpu_custom_call.1} parent=5 // pred_fallthru
        _
      %p157 = scmp.lt.s32.totalorder %s22, 2
      // Predicated region
      $region13: #{tpu_custom_call.1} parent=5 // pred_check
        %p158 = pneg %p157
      $region14: #{tpu_custom_call.1} parent=5 // pred_check_branch
        %160 = sbr.rel (%p158) target = $region16
      $region15: #{tpu_custom_call.1} parent=5 // pred_region
        // Predicated region
        $region17: #{tpu_custom_call.1} parent=15 // pred_check
          %p161 = pneg %p56
        $region18: #{tpu_custom_call.1} parent=15 // pred_check_branch
          %163 = sbr.rel (%p161) target = $region20
        $region19: #{tpu_custom_call.1} parent=15 // pred_region
          %s164 = sand.u32 %s46, 1
          %s165 = scalar_lea.sflag [#allocation5], %s164
          %s166 = sand.u32 %s46, 1
          %s167 = smul.addr %s166, 8
          %s168 = scalar_lea.vmem [#allocation4], %s167
          %s170 = ssub.s32 128, 128
          %171 = vsyncadd %s165, %s170
          %s172 = smul.addr %s30, 4
          %s173 = smul.addr %s29, 4
          %s174 = sadd.s32 %s172, %s173
          %s175 = smul.addr %s174, 32
          %s176 = scalar_lea.hbm %s0, %s175
          %s178 = sshll.u32 %s168, 4
          %s179 = int_to_ptr.vmem [resolvable:$true] %s178
          %181 = dma.hbm_to_vmem [thread:$0]  %s176, 128, %s179, %s165
        $region20: #{tpu_custom_call.1} parent=15 // pred_fallthru
          _
        // Predicated region
        $region21: #{tpu_custom_call.1} parent=15 // pred_check
          %p182 = pneg %p84
        $region22: #{tpu_custom_call.1} parent=15 // pred_check_branch
          %184 = sbr.rel (%p182) target = $region24
        $region23: #{tpu_custom_call.1} parent=15 // pred_region
          %s185 = sand.u32 %s74, 1
          %s186 = scalar_lea.sflag [#allocation8], %s185
          %s187 = sand.u32 %s74, 1
          %s188 = smul.addr %s187, 8
          %s189 = scalar_lea.vmem [#allocation7], %s188
          %s191 = ssub.s32 128, 128
          %192 = vsyncadd %s186, %s191
          %s193 = smul.addr %s30, 4
          %s194 = smul.addr %s29, 4
          %s195 = sadd.s32 %s193, %s194
          %s196 = smul.addr %s195, 32
          %s197 = scalar_lea.hbm %s1, %s196
          %s199 = sshll.u32 %s189, 4
          %s200 = int_to_ptr.vmem [resolvable:$true] %s199
          %202 = dma.hbm_to_vmem [thread:$0]  %s197, 128, %s200, %s186
        $region24: #{tpu_custom_call.1} parent=15 // pred_fallthru
          _
      $region16: #{tpu_custom_call.1} parent=5 // pred_fallthru
        _
      %p203 = scmp.le.s32.totalorder 1, %s22
      %p204 = scmp.lt.s32.totalorder %s22, 3
      %p205 = pnand %p203, %p204
      %p206 = pneg %p205
      // Predicated region
      $region25: #{tpu_custom_call.1} parent=5 // pred_check
        _
      $region26: #{tpu_custom_call.1} parent=5 // pred_check_branch
        %208 = sbr.rel (%p205) target = $region28
      $region27: #{tpu_custom_call.1} parent=5 // pred_region
        %s209 = ssub.s32 %s22, 1
        %s210 = sand.u32 %s49, 1
        %s211 = scalar_lea.sflag [#allocation5], %s210
        %s212 = sand.u32 %s49, 1
        %s213 = smul.addr %s212, 8
        %s214 = scalar_lea.vmem [#allocation4], %s213
        // Predicated region
        $region29: #{tpu_custom_call.1} parent=27 // pred_check
          %p215 = pneg %p62
        $region30: #{tpu_custom_call.1} parent=27 // pred_check_branch
          %217 = sbr.rel (%p215) target = $region32
        $region31: #{tpu_custom_call.1} parent=27 // pred_region
          %218 = dma.done %s211, 128
        $region32: #{tpu_custom_call.1} parent=27 // pred_fallthru
          _
        %s219 = sand.u32 %s77, 1
        %s220 = scalar_lea.sflag [#allocation8], %s219
        %s221 = sand.u32 %s77, 1
        %s222 = smul.addr %s221, 8
        %s223 = scalar_lea.vmem [#allocation7], %s222
        // Predicated region
        $region33: #{tpu_custom_call.1} parent=27 // pred_check
          %p224 = pneg %p90
        $region34: #{tpu_custom_call.1} parent=27 // pred_check_branch
          %226 = sbr.rel (%p224) target = $region36
        $region35: #{tpu_custom_call.1} parent=27 // pred_region
          %227 = dma.done %s220, 128
        $region36: #{tpu_custom_call.1} parent=27 // pred_fallthru
          _
        %s228 = sand.u32 %s49, 1
        %s229 = scalar_lea.sflag [#allocation5], %s228
        %s230 = sand.u32 %s49, 1
        %s231 = smul.addr %s230, 8
        %s232 = scalar_lea.vmem [#allocation4], %s231
        %p233 = pneg %p62
        %p234 = pneg %p59
        %s235 = sand.u32 %s77, 1
        %s236 = scalar_lea.sflag [#allocation8], %s235
        %s237 = sand.u32 %s77, 1
        %s238 = smul.addr %s237, 8
        %s239 = scalar_lea.vmem [#allocation7], %s238
        %p240 = pneg %p90
        %p241 = pneg %p87
        %p242 = pneg %p116
        %p243 = pneg %p113
        %s244 = sand.u32 %s103, 1
        %s245 = scalar_lea.sflag [#allocation6], %s244
        %s246 = sand.u32 %s103, 1
        %s247 = smul.addr %s246, 8
        %s248 = scalar_lea.vmem [#allocation9], %s247
        %p249 = pneg %p142
        %p250 = pneg %p139
        %s251 = sand.u32 %s129, 1
        %s252 = scalar_lea.sflag [#allocation11], %s251
        %s253 = sand.u32 %s129, 1
        %s254 = smul.addr %s253, 8
        %s255 = scalar_lea.vmem [#allocation10], %s254
        %p256 = scmp.eq.s32.totalorder %s32, 0
        // Predicated region
        $region37: #{tpu_custom_call.1} parent=27 // pred_check
          %p257 = pneg %p256
        $region38: #{tpu_custom_call.1} parent=27 // pred_check_branch
          %259 = sbr.rel (%p257) target = $region40
        $region39: #{tpu_custom_call.1} parent=27 // pred_region
          %260 = vst [vmem:[#allocation2] sm:$0xff] 0.0
          %261 = vst [vmem:[#allocation3] sm:$0xff] 0.0
        $region40: #{tpu_custom_call.1} parent=27 // pred_fallthru
          _
        %v262 = vld [vmem:[%s214] sm:$0xff]
        %v263 = vld [vmem:[%s223] sm:$0xff]
        %v264 = vmul.f32 %v262, %v263
        %v265 = vadd.f32 %v262, %v263
        %v266 = vld [vmem:[#allocation2] sm:$0xff]
        %v267 = vadd.f32 %v266, %v264
        %268 = vst [vmem:[#allocation2] sm:$0xff] %v267
        %v269 = vld [vmem:[#allocation3] sm:$0xff]
        %v270 = vadd.f32 %v269, %v265
        %271 = vst [vmem:[#allocation3] sm:$0xff] %v270
        // Predicated region
        $region41: #{tpu_custom_call.1} parent=27 // pred_check
          %p272 = pneg %p256
        $region42: #{tpu_custom_call.1} parent=27 // pred_check_branch
          %274 = sbr.rel (%p272) target = $region44
        $region43: #{tpu_custom_call.1} parent=27 // pred_region
          %v275 = vld [vmem:[#allocation2] sm:$0xff]
          %v277 = vcombine.high %v275, %v275
          %v279 = vunpack.c.l.s4 1983009808
          %v280 = vunpack.c.0.s8 %v279
          %v281 = vlaneseq
          %v282 = vshrl.u32 %v281, 7
          %v283 = vsub.s32 %v280, %v282
          %v284 = vrot.slane %v275, %v283
          %v286 = vunpack.c.l.s4 1983009808
          %v287 = vunpack.c.0.s8 %v286
          %v288 = vlaneseq
          %v289 = vshrl.u32 %v288, 7
          %v290 = vsub.s32 %v287, %v289
          %v291 = vrot.slane %v277, %v290
          %v292 = vcombine.high %v284, %v284
          %v293 = vcombine.high %v291, %v291
          %vm298 = vcmask 1041408
          %v299 = vsel %vm298, %v284, 0.0
          %v300 = vsel %vm298, %v292, 0.0
          %v301 = vadd.f32 %v299, %v300
          %v302 = vsel %vm298, %v291, 0.0
          %v303 = vadd.f32 %v301, %v302
          %v304 = vsel %vm298, %v293, 0.0
          %v305 = vadd.f32 %v303, %v304
          %306 = vadd.xlane.f32.xlu0 %v305
          %v307 = vpop.xlane.xlu0 %306
          %v308 = vrot.slane %v307, 4
          %v309 = vadd.f32 %v307, %v308
          %v310 = vrot.slane %v309, 2
          %v311 = vadd.f32 %v309, %v310
          %v312 = vrot.slane %v311, 1
          %v313 = vadd.f32 %v311, %v312
          %s314 = vtos %v313
          %v315 = vld [vmem:[#allocation3] sm:$0xff]
          %v317 = vcombine.high %v315, %v315
          %v319 = vunpack.c.l.s4 1983009808
          %v320 = vunpack.c.0.s8 %v319
          %v321 = vlaneseq
          %v322 = vshrl.u32 %v321, 7
          %v323 = vsub.s32 %v320, %v322
          %v324 = vrot.slane %v315, %v323
          %v326 = vunpack.c.l.s4 1983009808
          %v327 = vunpack.c.0.s8 %v326
          %v328 = vlaneseq
          %v329 = vshrl.u32 %v328, 7
          %v330 = vsub.s32 %v327, %v329
          %v331 = vrot.slane %v317, %v330
          %v332 = vcombine.high %v324, %v324
          %v333 = vcombine.high %v331, %v331
          %v338 = vsel %vm298, %v324, 0.0
          %v339 = vsel %vm298, %v332, 0.0
          %v340 = vadd.f32 %v338, %v339
          %v341 = vsel %vm298, %v331, 0.0
          %v342 = vadd.f32 %v340, %v341
          %v343 = vsel %vm298, %v333, 0.0
          %v344 = vadd.f32 %v342, %v343
          %345 = vadd.xlane.f32.xlu0 %v344
          %v346 = vpop.xlane.xlu0 %345
          %v347 = vrot.slane %v346, 4
          %v348 = vadd.f32 %v346, %v347
          %v349 = vrot.slane %v348, 2
          %v350 = vadd.f32 %v348, %v349
          %v351 = vrot.slane %v350, 1
          %v352 = vadd.f32 %v350, %v351
          %s353 = vtos %v352
          %v354 = vstv %s314
          %355 = vst [vmem:[%s248] sm:$0xff] %v354
          %v356 = vstv %s353
          %357 = vst [vmem:[%s255] sm:$0xff] %v356
        $region44: #{tpu_custom_call.1} parent=27 // pred_fallthru
          _
        %s358 = sand.u32 %s103, 1
        %s359 = scalar_lea.sflag [#allocation6], %s358
        %s360 = sand.u32 %s103, 1
        %s361 = smul.addr %s360, 8
        %s362 = scalar_lea.vmem [#allocation9], %s361
        %s363 = sand.u32 %s129, 1
        %s364 = scalar_lea.sflag [#allocation11], %s363
        %s365 = sand.u32 %s129, 1
        %s366 = smul.addr %s365, 8
        %s367 = scalar_lea.vmem [#allocation10], %s366
        // Predicated region
        $region45: #{tpu_custom_call.1} parent=27 // pred_check
          %p368 = pneg %p113
        $region46: #{tpu_custom_call.1} parent=27 // pred_check_branch
          %370 = sbr.rel (%p368) target = $region48
        $region47: #{tpu_custom_call.1} parent=27 // pred_region
          %s372 = ssub.s32 128, 128
          %373 = vsyncadd %s359, %s372
          %s374 = smul.addr %s31, 128
          %s375 = scalar_lea.hbm %s2, %s374
          %s377 = sshll.u32 %s362, 4
          %s378 = int_to_ptr.vmem [resolvable:$true] %s377
          %380 = dma.vmem_to_hbm [thread:$0]  %s378, 128, %s375, %s359
        $region48: #{tpu_custom_call.1} parent=27 // pred_fallthru
          _
        // Predicated region
        $region49: #{tpu_custom_call.1} parent=27 // pred_check
          %p381 = pneg %p139
        $region50: #{tpu_custom_call.1} parent=27 // pred_check_branch
          %383 = sbr.rel (%p381) target = $region52
        $region51: #{tpu_custom_call.1} parent=27 // pred_region
          %s385 = ssub.s32 128, 128
          %386 = vsyncadd %s364, %s385
          %s387 = smul.addr %s31, 128
          %s388 = scalar_lea.hbm %s3, %s387
          %s390 = sshll.u32 %s367, 4
          %s391 = int_to_ptr.vmem [resolvable:$true] %s390
          %393 = dma.vmem_to_hbm [thread:$0]  %s391, 128, %s388, %s364
        $region52: #{tpu_custom_call.1} parent=27 // pred_fallthru
          _
      $region28: #{tpu_custom_call.1} parent=5 // pred_fallthru
        _
      %p394 = scmp.le.s32.totalorder 2, %s22
      // Predicated region
      $region53: #{tpu_custom_call.1} parent=5 // pred_check
        %p395 = pneg %p394
      $region54: #{tpu_custom_call.1} parent=5 // pred_check_branch
        %397 = sbr.rel (%p395) target = $region56
      $region55: #{tpu_custom_call.1} parent=5 // pred_region
        %s398 = ssub.s32 %s22, 2
        // Predicated region
        $region57: #{tpu_custom_call.1} parent=55 // pred_check
          %p399 = pneg %p119
        $region58: #{tpu_custom_call.1} parent=55 // pred_check_branch
          %401 = sbr.rel (%p399) target = $region60
        $region59: #{tpu_custom_call.1} parent=55 // pred_region
          %s402 = sand.u32 %s104, 1
          %s403 = scalar_lea.sflag [#allocation6], %s402
          %s404 = sand.u32 %s104, 1
          %s405 = smul.addr %s404, 8
          %s406 = scalar_lea.vmem [#allocation9], %s405
          %407 = dma.done %s403, 128
        $region60: #{tpu_custom_call.1} parent=55 // pred_fallthru
          _
        // Predicated region
        $region61: #{tpu_custom_call.1} parent=55 // pred_check
          %p408 = pneg %p145
        $region62: #{tpu_custom_call.1} parent=55 // pred_check_branch
          %410 = sbr.rel (%p408) target = $region64
        $region63: #{tpu_custom_call.1} parent=55 // pred_region
          %s411 = sand.u32 %s130, 1
          %s412 = scalar_lea.sflag [#allocation11], %s411
          %s413 = sand.u32 %s130, 1
          %s414 = smul.addr %s413, 8
          %s415 = scalar_lea.vmem [#allocation10], %s414
          %416 = dma.done %s412, 128
        $region64: #{tpu_custom_call.1} parent=55 // pred_fallthru
          _
      $region56: #{tpu_custom_call.1} parent=5 // pred_fallthru
        _
    $region6: #{tpu_custom_call.1} parent=1 // loop_footer
      %s26 = sadd.s32 1, %s22
    $region7: #{tpu_custom_call.1} parent=1 // loop_footer_branch
      %21 = sbr.rel target = $region3
    $region8: #{tpu_custom_call.1} parent=1 // loop_exit
      _
    %417 = vsyncpa [#allocation5], 1
    %s418 = scalar_lea.sflag [#allocation5], 1
    %419 = vsyncpa %s418, 1
    %420 = vsyncpa [#allocation8], 1
    %s421 = scalar_lea.sflag [#allocation8], 1
    %422 = vsyncpa %s421, 1
    %423 = vsyncpa [#allocation6], 1
    %s424 = scalar_lea.sflag [#allocation6], 1
    %425 = vsyncpa %s424, 1
    %426 = vsyncpa [#allocation11], 1
    %s427 = scalar_lea.sflag [#allocation11], 1
    %428 = vsyncpa %s427, 1

</llo_original>
